<compile_context>
chip_gen: v5e
topology: v5e:2x2
jax: 0.10.0
libtpu: 0.0.40
codegen_flags: <defaults>
</compile_context>

<pallas_src>
import jax
import jax.numpy as jnp
from jax import lax
from jax.experimental import pallas as pl
from jax.experimental.pallas import tpu as pltpu


def _ffn_kernel(x_ref, w1_ref, b1_ref, w2_ref, b2_ref, o_ref):
    # x_ref : (TM, E)
    # w1_ref: (hidden, E)   PyTorch Linear layout -> contract E vs E (dims 1,1), no transpose
    # w2_ref: (E, hidden)   contract hidden vs hidden (dims 1,1), no transpose
    x = x_ref[...]
    h = lax.dot_general(x, w1_ref[...], (((1,), (1,)), ((), ())),
                        preferred_element_type=jnp.float32)
    h = jnp.maximum(h + b1_ref[...], 0.0)                      # bias + ReLU on the VPU
    y = lax.dot_general(h, w2_ref[...], (((1,), (1,)), ((), ())),
                        preferred_element_type=jnp.float32)
    o_ref[...] = (y + b2_ref[...]).astype(o_ref.dtype)


def _round_up(v, m):
    return (v + m - 1) // m * m


def feed_forward(x, w1, b1, w2, b2, *, block_rows=256):
    """PyTorch FeedForward forward pass: relu(x @ w1.T + b1) @ w2.T + b2.

    x : (..., E)  float32
    w1: (hidden, E), b1: (hidden,)   -- nn.Linear(embed_dim, hidden_dim) weights (PyTorch layout)
    w2: (E, hidden), b2: (E,)        -- nn.Linear(hidden_dim, embed_dim) weights
    """
    orig_shape = x.shape
    E = orig_shape[-1]
    hidden = w1.shape[0]
    assert w1.shape == (hidden, E), w1.shape
    assert w2.shape == (E, hidden), w2.shape

    # Flatten all leading dims into a single row axis and tile it.
    x2 = x.reshape(-1, E)
    M = x2.shape[0]
    TM = min(_round_up(block_rows, 8), _round_up(M, 8))
    Mp = _round_up(M, TM)
    if Mp != M:
        x2 = jnp.pad(x2, ((0, Mp - M), (0, 0)))

    b1r = b1.reshape(1, hidden)
    b2r = b2.reshape(1, E)

    grid = (Mp // TM,)

    def full(shape):
        return pl.BlockSpec(shape, lambda i: (0,) * len(shape))

    # Scoped VMEM hint: resident weights (default-double-buffered) + activation tiles + headroom,
    # clamped below the v7x 64 MiB physical ceiling.
    itemsize = jnp.dtype(x.dtype).itemsize
    w_bytes = (w1.size + w2.size + b1.size + b2.size) * itemsize
    tile_bytes = (2 * TM * E + TM * hidden) * 4
    vmem_limit = int(min(max(3 * (w_bytes + tile_bytes), 32 * 1024 * 1024),
                         60 * 1024 * 1024))

    out = pl.pallas_call(
        _ffn_kernel,
        out_shape=jax.ShapeDtypeStruct((Mp, E), x.dtype),
        grid=grid,
        in_specs=[
            pl.BlockSpec((TM, E), lambda i: (i, 0)),   # x row tile
            full((hidden, E)),                         # w1 (resident)
            full((1, hidden)),                         # b1
            full((E, hidden)),                         # w2 (resident)
            full((1, E)),                              # b2
        ],
        out_specs=pl.BlockSpec((TM, E), lambda i: (i, 0)),
        compiler_params=pltpu.CompilerParams(
            dimension_semantics=("parallel",),
            vmem_limit_bytes=vmem_limit),
    )(x2, w1, b1r, w2, b2r)

    return out[:M].reshape(orig_shape)


# ---------------- pure-JAX reference (validation only) ----------------
def reference_ffn(x, w1, b1, w2, b2):
    h = jnp.maximum(x @ w1.T + b1, 0.0)
    return h @ w2.T + b2


if __name__ == "__main__":
    # Small, lane-aligned shapes: batch=4, seq=32, embed_dim=128, hidden_dim=256.
    B, S, E, HID = 4, 32, 128, 256
    key = jax.random.PRNGKey(0)
    kx, k1, k2, k3, k4 = jax.random.split(key, 5)

    x = jax.random.normal(kx, (B, S, E), jnp.float32)
    s = 0.05
    w1 = s * jax.random.normal(k1, (HID, E), jnp.float32)
    b1 = s * jax.random.normal(k2, (HID,), jnp.float32)
    w2 = s * jax.random.normal(k3, (E, HID), jnp.float32)
    b2 = s * jax.random.normal(k4, (E,), jnp.float32)

    out = feed_forward(x, w1, b1, w2, b2, block_rows=64)   # M=128 rows -> grid=(2,)
    out = jax.block_until_ready(out)

    ref = reference_ffn(x, w1, b1, w2, b2)
    assert out.shape == x.shape
    max_err = jnp.max(jnp.abs(out - ref))
    assert jnp.allclose(out, ref, atol=1e-4, rtol=1e-4), f"max abs err {max_err}"

    print("KERNEL_OK")
</pallas_src>

<mosaic_0001>
module attributes {stable_mosaic.version = 11 : i64} {
  func.func @_ffn_kernel(%arg0: i32, %arg1: memref<64x128xf32, #tpu.memory_space<vmem>>, %arg2: memref<256x128xf32, #tpu.memory_space<vmem>>, %arg3: memref<1x256xf32, #tpu.memory_space<vmem>>, %arg4: memref<128x256xf32, #tpu.memory_space<vmem>>, %arg5: memref<1x128xf32, #tpu.memory_space<vmem>>, %arg6: memref<64x128xf32, #tpu.memory_space<vmem>>) attributes {dimension_semantics = [#tpu.dimension_semantics<parallel>], iteration_bounds = array<i64: 2>, scalar_prefetch = 0 : i64, scratch_operands = 0 : i64, tpu.core_type = #tpu.core_type<tc>, window_params = [{transform_indices = @transform_0, window_bounds = array<i64: 64, 128>}, {pipeline_mode = #tpu.pipeline_mode<synchronous>, transform_indices = @transform_1, window_bounds = array<i64: 256, 128>}, {pipeline_mode = #tpu.pipeline_mode<synchronous>, transform_indices = @transform_2, window_bounds = array<i64: 1, 256>}, {pipeline_mode = #tpu.pipeline_mode<synchronous>, transform_indices = @transform_3, window_bounds = array<i64: 128, 256>}, {pipeline_mode = #tpu.pipeline_mode<synchronous>, transform_indices = @transform_4, window_bounds = array<i64: 1, 128>}, {transform_indices = @transform_5, window_bounds = array<i64: 64, 128>}]} {
    %c0 = arith.constant 0 : index
    %c0_0 = arith.constant 0 : index
    %0 = vector.load %arg1[%c0, %c0_0] : memref<64x128xf32, #tpu.memory_space<vmem>>, vector<64x128xf32>
    %c0_1 = arith.constant 0 : index
    %c0_2 = arith.constant 0 : index
    %1 = vector.load %arg2[%c0_1, %c0_2] : memref<256x128xf32, #tpu.memory_space<vmem>>, vector<256x128xf32>
    %cst = arith.constant dense<0.000000e+00> : vector<64x256xf32>
    %2 = tpu.matmul %0, %1, %cst {dimension_numbers = #tpu.dot_dimension_numbers<[1], [1], [0], [0], [0, 0, 1, 0], [], []>} : vector<64x128xf32>, vector<256x128xf32>, vector<64x256xf32> -> vector<64x256xf32>
    %c0_3 = arith.constant 0 : index
    %c0_4 = arith.constant 0 : index
    %3 = vector.load %arg3[%c0_3, %c0_4] : memref<1x256xf32, #tpu.memory_space<vmem>>, vector<1x256xf32>
    %4 = vector.broadcast %3 : vector<1x256xf32> to vector<64x256xf32>
    %5 = arith.addf %2, %4 : vector<64x256xf32>
    %cst_5 = arith.constant 0.000000e+00 : f32
    %6 = vector.broadcast %cst_5 : f32 to vector<64x256xf32>
    %7 = arith.maximumf %5, %6 : vector<64x256xf32>
    %c0_6 = arith.constant 0 : index
    %c0_7 = arith.constant 0 : index
    %8 = vector.load %arg4[%c0_6, %c0_7] : memref<128x256xf32, #tpu.memory_space<vmem>>, vector<128x256xf32>
    %cst_8 = arith.constant dense<0.000000e+00> : vector<64x128xf32>
    %9 = tpu.matmul %7, %8, %cst_8 {dimension_numbers = #tpu.dot_dimension_numbers<[1], [1], [0], [0], [0, 0, 1, 0], [], []>} : vector<64x256xf32>, vector<128x256xf32>, vector<64x128xf32> -> vector<64x128xf32>
    %c0_9 = arith.constant 0 : index
    %c0_10 = arith.constant 0 : index
    %10 = vector.load %arg5[%c0_9, %c0_10] : memref<1x128xf32, #tpu.memory_space<vmem>>, vector<1x128xf32>
    %11 = vector.broadcast %10 : vector<1x128xf32> to vector<64x128xf32>
    %12 = arith.addf %9, %11 : vector<64x128xf32>
    %c0_11 = arith.constant 0 : index
    %c0_12 = arith.constant 0 : index
    %13 = vector.load %arg6[%c0_11, %c0_12] : memref<64x128xf32, #tpu.memory_space<vmem>>, vector<64x128xf32>
    tpu.vector_store %arg6[%c0_11, %c0_12], %12 {strides = array<i32>} : memref<64x128xf32, #tpu.memory_space<vmem>>, vector<64x128xf32>,
    return
  }
  func.func @transform_0(%arg0: i32) -> (i32, i32) {
    %c0_i32 = arith.constant 0 : i32
    %c0_i32_0 = arith.constant 0 : i32
    return %arg0, %c0_i32 : i32, i32
  }
  func.func @transform_1(%arg0: i32) -> (i32, i32) {
    %c0_i32 = arith.constant 0 : i32
    %c0_i32_0 = arith.constant 0 : i32
    %c0_i32_1 = arith.constant 0 : i32
    return %c0_i32, %c0_i32_0 : i32, i32
  }
  func.func @transform_2(%arg0: i32) -> (i32, i32) {
    %c0_i32 = arith.constant 0 : i32
    %c0_i32_0 = arith.constant 0 : i32
    %c0_i32_1 = arith.constant 0 : i32
    return %c0_i32, %c0_i32_0 : i32, i32
  }
  func.func @transform_3(%arg0: i32) -> (i32, i32) {
    %c0_i32 = arith.constant 0 : i32
    %c0_i32_0 = arith.constant 0 : i32
    %c0_i32_1 = arith.constant 0 : i32
    return %c0_i32, %c0_i32_0 : i32, i32
  }
  func.func @transform_4(%arg0: i32) -> (i32, i32) {
    %c0_i32 = arith.constant 0 : i32
    %c0_i32_0 = arith.constant 0 : i32
    %c0_i32_1 = arith.constant 0 : i32
    return %c0_i32, %c0_i32_0 : i32, i32
  }
  func.func @transform_5(%arg0: i32) -> (i32, i32) {
    %c0_i32 = arith.constant 0 : i32
    %c0_i32_0 = arith.constant 0 : i32
    return %arg0, %c0_i32 : i32, i32
  }
}

</mosaic_0001>

<llo_original>
// kernel: tpu_custom_call.1
$region0: #{tpu_custom_call.1}
  #allocation0 [shape = 'u32[]', space=smem, size = 0x4, offset = 0x4, fixed_abs, tag = 'smem constant byte address 0x4 - core index']
  #allocation1 [shape = 'u32[72,128]{1,0:T(1,128)}', space=vmem, size = 0x9000, scoped, tag = 'internal scratch']
  %s0 = inlined_call_operand.hbm [shape: f32[128,128], index: 0, kind: input, shape index: {}]
  %s1 = inlined_call_operand.hbm [shape: f32[256,128], index: 1, kind: input, shape index: {}]
  %s2 = inlined_call_operand.hbm [shape: f32[1,256], index: 2, kind: input, shape index: {}]
  %s3 = inlined_call_operand.hbm [shape: f32[128,256], index: 3, kind: input, shape index: {}]
  %s4 = inlined_call_operand.vmem [shape: f32[1,128], index: 4, kind: input, shape index: {}]
  %s5 = inlined_call_operand.hbm [shape: f32[128,128], index: 5, kind: output, shape index: {}]
  %s6 = sld [smem:[#allocation0]]
  $region69: #{tpu_custom_call.1} parent=0
    _
  %s8 = ssub.s32 1, %s6
  %s9 = scalar_select 0, %s8, %s6
  $region1: #{tpu_custom_call.1} parent=0
    #allocation2 [shape = 'u8[65536]{0}', space=vmem, size = 0x10000, scoped, tag = 'input window, operand 0']
    #allocation3 [shape = 's32[2]{0}', space=sflag, size = 0x8, scoped, tag = 'scoped memory for tpu_custom_call.1']
    #allocation4 [shape = 's32[2]{0}', space=sflag, size = 0x8, scoped, tag = 'scoped memory for tpu_custom_call.1']
    #allocation5 [shape = 'u8[131072]{0}', space=vmem, size = 0x20000, scoped, tag = 'input window, operand 1, single buffered']
    #allocation6 [shape = 's32[1]{0}', space=sflag, size = 0x4, scoped, tag = 'scoped memory for tpu_custom_call.1']
    #allocation7 [shape = 'u8[1024]{0}', space=vmem, size = 0x400, scoped, tag = 'input window, operand 2, single buffered']
    #allocation8 [shape = 'u8[131072]{0}', space=vmem, size = 0x20000, scoped, tag = 'input window, operand 3, single buffered']
    #allocation9 [shape = 's32[1]{0}', space=sflag, size = 0x4, scoped, tag = 'scoped memory for tpu_custom_call.1']
    #allocation10 [shape = 'u8[65536]{0}', space=vmem, size = 0x10000, scoped, tag = 'output window, operand 0']
    %10 = vsyncpa [#allocation3], 0
    %s11 = scalar_lea.sflag [#allocation3], 1
    %12 = vsyncpa %s11, 0
    %13 = vsyncpa [#allocation6], 0
    %14 = vsyncpa [#allocation9], 0
    %15 = vsyncpa [#allocation4], 0
    %s16 = scalar_lea.sflag [#allocation4], 1
    %17 = vsyncpa %s16, 0
    loop: start=0, step=1, limit=4
    $region2: #{tpu_custom_call.1} parent=1 // loop_pre_header
      _
    $region3: #{tpu_custom_call.1} parent=1 // loop_header
      %s19 = sphi 0, %s23
      %p20 = scmp.ge.s32.totalorder %s19, 4
      %s29 = sphi 0, %s31
      %s32 = sphi 0, %s29
      %s33 = sphi 0, %s32
      %s49 = sphi 0, %s33
      %s53 = sphi 0, %s53
      %s55 = sphi 0, %s53
      %s56 = sphi 0, %s55
      %s70 = sphi 0, %s56
      %s74 = sphi 0, %s74
      %s76 = sphi 0, %s74
      %s77 = sphi 0, %s76
      %s91 = sphi 0, %s77
      %s95 = sphi 0, %s95
      %s97 = sphi 0, %s95
      %s98 = sphi 0, %s97
      %s112 = sphi 0, %s98
      %s116 = sphi 0, %s116
      %s118 = sphi 0, %s116
      %s119 = sphi 0, %s118
      %s133 = sphi 0, %s119
      %s139 = sphi 0, %s141
      %s142 = sphi 0, %s139
      %s143 = sphi 0, %s142
      %s159 = sphi 0, %s143
    $region4: #{tpu_custom_call.1} parent=1 // loop_header_branch
      %22 = sbr.rel (%p20) target = $region8
    $region5: #{tpu_custom_call.1} parent=1 // loop_body
      %s24 = ssub.s32 %s19, 1
      %s25 = ssub.s32 %s19, 2
      %s26 = sadd.s32 %s19, 1
      %s27 = ssub.s32 %s19, %s26
      %p28 = scmp.eq.s32.totalorder %s27, 0
      %s30 = sadd.s32 %s29, 1
      %s31 = scalar_select %p28, %s29, %s30
      %p34 = pneg %p28
      %p35 = scmp.eq.s32.totalorder %s19, 1
      %p36 = por %p34, %p35
      %p37 = scmp.ne.s32.totalorder %s29, %s32
      %p38 = scmp.eq.s32.totalorder %s19, 0
      %p39 = por %p37, %p38
      %p40 = scmp.ne.s32.totalorder %s29, %s32
      %p41 = scmp.eq.s32.totalorder %s24, 1
      %p42 = por %p40, %p41
      %p43 = scmp.ne.s32.totalorder %s32, %s33
      %p44 = scmp.eq.s32.totalorder %s24, 0
      %p45 = por %p43, %p44
      %p46 = scmp.ne.s32.totalorder %s32, %s33
      %p47 = scmp.eq.s32.totalorder %s25, 1
      %p48 = por %p46, %p47
      %p50 = scmp.ne.s32.totalorder %s33, %s49
      %p51 = scmp.eq.s32.totalorder %s25, 0
      %p52 = por %p50, %p51
      %s54 = sadd.s32 %s53, 1
      %p57 = scmp.eq.s32.totalorder %s19, 1
      %p58 = scmp.ne.s32.totalorder %s53, %s55
      %p59 = scmp.eq.s32.totalorder %s19, 0
      %p60 = por %p58, %p59
      %p61 = scmp.ne.s32.totalorder %s53, %s55
      %p62 = scmp.eq.s32.totalorder %s24, 1
      %p63 = por %p61, %p62
      %p64 = scmp.ne.s32.totalorder %s55, %s56
      %p65 = scmp.eq.s32.totalorder %s24, 0
      %p66 = por %p64, %p65
      %p67 = scmp.ne.s32.totalorder %s55, %s56
      %p68 = scmp.eq.s32.totalorder %s25, 1
      %p69 = por %p67, %p68
      %p71 = scmp.ne.s32.totalorder %s56, %s70
      %p72 = scmp.eq.s32.totalorder %s25, 0
      %p73 = por %p71, %p72
      %s75 = sadd.s32 %s74, 1
      %p78 = scmp.eq.s32.totalorder %s19, 1
      %p79 = scmp.ne.s32.totalorder %s74, %s76
      %p80 = scmp.eq.s32.totalorder %s19, 0
      %p81 = por %p79, %p80
      %p82 = scmp.ne.s32.totalorder %s74, %s76
      %p83 = scmp.eq.s32.totalorder %s24, 1
      %p84 = por %p82, %p83
      %p85 = scmp.ne.s32.totalorder %s76, %s77
      %p86 = scmp.eq.s32.totalorder %s24, 0
      %p87 = por %p85, %p86
      %p88 = scmp.ne.s32.totalorder %s76, %s77
      %p89 = scmp.eq.s32.totalorder %s25, 1
      %p90 = por %p88, %p89
      %p92 = scmp.ne.s32.totalorder %s77, %s91
      %p93 = scmp.eq.s32.totalorder %s25, 0
      %p94 = por %p92, %p93
      %s96 = sadd.s32 %s95, 1
      %p99 = scmp.eq.s32.totalorder %s19, 1
      %p100 = scmp.ne.s32.totalorder %s95, %s97
      %p101 = scmp.eq.s32.totalorder %s19, 0
      %p102 = por %p100, %p101
      %p103 = scmp.ne.s32.totalorder %s95, %s97
      %p104 = scmp.eq.s32.totalorder %s24, 1
      %p105 = por %p103, %p104
      %p106 = scmp.ne.s32.totalorder %s97, %s98
      %p107 = scmp.eq.s32.totalorder %s24, 0
      %p108 = por %p106, %p107
      %p109 = scmp.ne.s32.totalorder %s97, %s98
      %p110 = scmp.eq.s32.totalorder %s25, 1
      %p111 = por %p109, %p110
      %p113 = scmp.ne.s32.totalorder %s98, %s112
      %p114 = scmp.eq.s32.totalorder %s25, 0
      %p115 = por %p113, %p114
      %s117 = sadd.s32 %s116, 1
      %p120 = scmp.eq.s32.totalorder %s19, 1
      %p121 = scmp.ne.s32.totalorder %s116, %s118
      %p122 = scmp.eq.s32.totalorder %s19, 0
      %p123 = por %p121, %p122
      %p124 = scmp.ne.s32.totalorder %s116, %s118
      %p125 = scmp.eq.s32.totalorder %s24, 1
      %p126 = por %p124, %p125
      %p127 = scmp.ne.s32.totalorder %s118, %s119
      %p128 = scmp.eq.s32.totalorder %s24, 0
      %p129 = por %p127, %p128
      %p130 = scmp.ne.s32.totalorder %s118, %s119
      %p131 = scmp.eq.s32.totalorder %s25, 1
      %p132 = por %p130, %p131
      %p134 = scmp.ne.s32.totalorder %s119, %s133
      %p135 = scmp.eq.s32.totalorder %s25, 0
      %p136 = por %p134, %p135
      %s137 = ssub.s32 %s19, %s26
      %p138 = scmp.eq.s32.totalorder %s137, 0
      %s140 = sadd.s32 %s139, 1
      %s141 = scalar_select %p138, %s139, %s140
      %p144 = pneg %p138
      %p145 = scmp.eq.s32.totalorder %s19, 1
      %p146 = por %p144, %p145
      %p147 = scmp.ne.s32.totalorder %s139, %s142
      %p148 = scmp.eq.s32.totalorder %s19, 0
      %p149 = por %p147, %p148
      %p150 = scmp.ne.s32.totalorder %s139, %s142
      %p151 = scmp.eq.s32.totalorder %s24, 1
      %p152 = por %p150, %p151
      %p153 = scmp.ne.s32.totalorder %s142, %s143
      %p154 = scmp.eq.s32.totalorder %s24, 0
      %p155 = por %p153, %p154
      %p156 = scmp.ne.s32.totalorder %s142, %s143
      %p157 = scmp.eq.s32.totalorder %s25, 1
      %p158 = por %p156, %p157
      %p160 = scmp.ne.s32.totalorder %s143, %s159
      %p161 = scmp.eq.s32.totalorder %s25, 0
      %p162 = por %p160, %p161
      %p163 = scmp.le.s32.totalorder 1, %s19
      %p164 = scmp.lt.s32.totalorder %s19, 3
      %p165 = pnand %p163, %p164
      %p166 = pneg %p165
      // Predicated region
      $region9: #{tpu_custom_call.1} parent=5 // pred_check
        _
      $region10: #{tpu_custom_call.1} parent=5 // pred_check_branch
        %168 = sbr.rel (%p165) target = $region12
      $region11: #{tpu_custom_call.1} parent=5 // pred_region
        %s169 = ssub.s32 %s19, 1
        // Predicated region
        $region13: #{tpu_custom_call.1} parent=11 // pred_check
          %p170 = pneg %p66
        $region14: #{tpu_custom_call.1} parent=11 // pred_check_branch
          %172 = sbr.rel (%p170) target = $region16
        $region15: #{tpu_custom_call.1} parent=11 // pred_region
          %174 = vsyncadd [#allocation6], 0
          %s175 = sshll.u32 %s1, 4
          %s176 = int_to_ptr.hbm [resolvable:$true] %s175
          %s177 = sshll.u32 [#allocation5], 4
          %s178 = int_to_ptr.vmem [resolvable:$true] %s177
          %183 = dma.hbm_to_vmem [thread:$0]  %s176, 4096, %s178, [#allocation6], 128, 128, 8
        $region16: #{tpu_custom_call.1} parent=11 // pred_fallthru
          _
        // Predicated region
        $region17: #{tpu_custom_call.1} parent=11 // pred_check
          %p184 = pneg %p87
        $region18: #{tpu_custom_call.1} parent=11 // pred_check_branch
          %186 = sbr.rel (%p184) target = $region20
        $region19: #{tpu_custom_call.1} parent=11 // pred_region
          %188 = vsyncadd [#allocation6], 0
          %s190 = sshll.u32 %s2, 4
          %s191 = int_to_ptr.hbm [resolvable:$true] %s190
          %s192 = sshll.u32 [#allocation7], 4
          %s193 = int_to_ptr.vmem [resolvable:$true] %s192
          %195 = dma.hbm_to_vmem [thread:$0]  %s191, 32, %s193, [#allocation6]
        $region20: #{tpu_custom_call.1} parent=11 // pred_fallthru
          _
        // Predicated region
        $region21: #{tpu_custom_call.1} parent=11 // pred_check
          %p196 = pneg %p108
        $region22: #{tpu_custom_call.1} parent=11 // pred_check_branch
          %198 = sbr.rel (%p196) target = $region24
        $region23: #{tpu_custom_call.1} parent=11 // pred_region
          %200 = vsyncadd [#allocation9], 0
          %s201 = sshll.u32 %s3, 4
          %s202 = int_to_ptr.hbm [resolvable:$true] %s201
          %s203 = sshll.u32 [#allocation8], 4
          %s204 = int_to_ptr.vmem [resolvable:$true] %s203
          %209 = dma.hbm_to_vmem [thread:$0]  %s202, 4096, %s204, [#allocation9], 256, 256, 16
        $region24: #{tpu_custom_call.1} parent=11 // pred_fallthru
          _
        // Predicated region
        $region25: #{tpu_custom_call.1} parent=11 // pred_check
          %p210 = pneg %p129
        $region26: #{tpu_custom_call.1} parent=11 // pred_check_branch
          %212 = sbr.rel (%p210) target = $region28
        $region27: #{tpu_custom_call.1} parent=11 // pred_region
          _
        $region28: #{tpu_custom_call.1} parent=11 // pred_fallthru
          _
      $region12: #{tpu_custom_call.1} parent=5 // pred_fallthru
        _
      %p213 = scmp.lt.s32.totalorder %s19, 2
      // Predicated region
      $region29: #{tpu_custom_call.1} parent=5 // pred_check
        %p214 = pneg %p213
      $region30: #{tpu_custom_call.1} parent=5 // pred_check_branch
        %216 = sbr.rel (%p214) target = $region32
      $region31: #{tpu_custom_call.1} parent=5 // pred_region
        // Predicated region
        $region33: #{tpu_custom_call.1} parent=31 // pred_check
          %p217 = pneg %p39
        $region34: #{tpu_custom_call.1} parent=31 // pred_check_branch
          %219 = sbr.rel (%p217) target = $region36
        $region35: #{tpu_custom_call.1} parent=31 // pred_region
          %s220 = sand.u32 %s29, 1
          %s221 = scalar_lea.sflag [#allocation3], %s220
          %s222 = sand.u32 %s29, 1
          %s223 = smul.addr %s222, 64
          %s224 = scalar_lea.vmem [#allocation2], %s223
          %s225 = smul.u32 8, %s19
          %227 = vsyncadd %s221, 0
          %s228 = smul.addr %s225, 8
          %s229 = scalar_lea.hbm %s0, %s228
          %s230 = sshll.u32 %s229, 4
          %s231 = int_to_ptr.hbm [resolvable:$true] %s230
          %s232 = sshll.u32 %s224, 4
          %s233 = int_to_ptr.vmem [resolvable:$true] %s232
          %238 = dma.hbm_to_vmem [thread:$0]  %s231, 1024, %s233, %s221, 128, 128, 8
        $region36: #{tpu_custom_call.1} parent=31 // pred_fallthru
          _
      $region32: #{tpu_custom_call.1} parent=5 // pred_fallthru
        _
      %p239 = scmp.le.s32.totalorder 1, %s19
      %p240 = scmp.lt.s32.totalorder %s19, 3
      %p241 = pnand %p239, %p240
      %p242 = pneg %p241
      // Predicated region
      $region37: #{tpu_custom_call.1} parent=5 // pred_check
        _
      $region38: #{tpu_custom_call.1} parent=5 // pred_check_branch
        %244 = sbr.rel (%p241) target = $region40
      $region39: #{tpu_custom_call.1} parent=5 // pred_region
        %s245 = ssub.s32 %s19, 1
        %s246 = sand.u32 %s32, 1
        %s247 = scalar_lea.sflag [#allocation3], %s246
        %s248 = sand.u32 %s32, 1
        %s249 = smul.addr %s248, 64
        %s250 = scalar_lea.vmem [#allocation2], %s249
        // Predicated region
        $region41: #{tpu_custom_call.1} parent=39 // pred_check
          %p251 = pneg %p45
        $region42: #{tpu_custom_call.1} parent=39 // pred_check_branch
          %253 = sbr.rel (%p251) target = $region44
        $region43: #{tpu_custom_call.1} parent=39 // pred_region
          %255 = dma.done %s247, 1024
        $region44: #{tpu_custom_call.1} parent=39 // pred_fallthru
          _
        // Predicated region
        $region45: #{tpu_custom_call.1} parent=39 // pred_check
          %p256 = pneg %p66
        $region46: #{tpu_custom_call.1} parent=39 // pred_check_branch
          %258 = sbr.rel (%p256) target = $region48
        $region47: #{tpu_custom_call.1} parent=39 // pred_region
          %260 = dma.done [#allocation6], 4096
        $region48: #{tpu_custom_call.1} parent=39 // pred_fallthru
          _
        // Predicated region
        $region49: #{tpu_custom_call.1} parent=39 // pred_check
          %p261 = pneg %p87
        $region50: #{tpu_custom_call.1} parent=39 // pred_check_branch
          %263 = sbr.rel (%p261) target = $region52
        $region51: #{tpu_custom_call.1} parent=39 // pred_region
          %265 = dma.done [#allocation6], 32
        $region52: #{tpu_custom_call.1} parent=39 // pred_fallthru
          _
        // Predicated region
        $region53: #{tpu_custom_call.1} parent=39 // pred_check
          %p266 = pneg %p108
        $region54: #{tpu_custom_call.1} parent=39 // pred_check_branch
          %268 = sbr.rel (%p266) target = $region56
        $region55: #{tpu_custom_call.1} parent=39 // pred_region
          %270 = dma.done [#allocation9], 4096
        $region56: #{tpu_custom_call.1} parent=39 // pred_fallthru
          _
        %s271 = sand.u32 %s32, 1
        %s272 = scalar_lea.sflag [#allocation3], %s271
        %s273 = sand.u32 %s32, 1
        %s274 = smul.addr %s273, 64
        %s275 = scalar_lea.vmem [#allocation2], %s274
        %p276 = pneg %p45
        %p277 = pneg %p42
        %p278 = pneg %p66
        %p279 = pneg %p63
        %p280 = pneg %p87
        %p281 = pneg %p84
        %p282 = pneg %p108
        %p283 = pneg %p105
        %p284 = pneg %p129
        %p285 = pneg %p126
        %p286 = pneg %p155
        %p287 = pneg %p152
        %s288 = sand.u32 %s142, 1
        %s289 = scalar_lea.sflag [#allocation4], %s288
        %s290 = sand.u32 %s142, 1
        %s291 = smul.addr %s290, 64
        %s292 = scalar_lea.vmem [#allocation10], %s291
        %s293 = smul.u32 8, %s24
        %s294 = smul.u32 8, %s24
        %v295 = vld [vmem:[%s250] sm:$0xff]
        %v296 = vld [vmem:[%s250 + $0x8] sm:$0xff]
        %v297 = vld [vmem:[%s250 + $0x10] sm:$0xff]
        %v298 = vld [vmem:[%s250 + $0x18] sm:$0xff]
        %v299 = vld [vmem:[%s250 + $0x20] sm:$0xff]
        %v300 = vld [vmem:[%s250 + $0x28] sm:$0xff]
        %v301 = vld [vmem:[%s250 + $0x30] sm:$0xff]
        %v302 = vld [vmem:[%s250 + $0x38] sm:$0xff]
        %v303 = vld [vmem:[#allocation5] sm:$0xff]
        %v304 = vld [vmem:[#allocation5 + $0x8] sm:$0xff]
        %v305 = vld [vmem:[#allocation5 + $0x10] sm:$0xff]
        %v306 = vld [vmem:[#allocation5 + $0x18] sm:$0xff]
        %v307 = vld [vmem:[#allocation5 + $0x20] sm:$0xff]
        %v308 = vld [vmem:[#allocation5 + $0x28] sm:$0xff]
        %v309 = vld [vmem:[#allocation5 + $0x30] sm:$0xff]
        %v310 = vld [vmem:[#allocation5 + $0x38] sm:$0xff]
        %v311 = vld [vmem:[#allocation5 + $0x40] sm:$0xff]
        %v312 = vld [vmem:[#allocation5 + $0x48] sm:$0xff]
        %v313 = vld [vmem:[#allocation5 + $0x50] sm:$0xff]
        %v314 = vld [vmem:[#allocation5 + $0x58] sm:$0xff]
        %v315 = vld [vmem:[#allocation5 + $0x60] sm:$0xff]
        %v316 = vld [vmem:[#allocation5 + $0x68] sm:$0xff]
        %v317 = vld [vmem:[#allocation5 + $0x70] sm:$0xff]
        %v318 = vld [vmem:[#allocation5 + $0x78] sm:$0xff]
        %v319 = vld [vmem:[#allocation5 + $0x80] sm:$0xff]
        %v320 = vld [vmem:[#allocation5 + $0x88] sm:$0xff]
        %v321 = vld [vmem:[#allocation5 + $0x90] sm:$0xff]
        %v322 = vld [vmem:[#allocation5 + $0x98] sm:$0xff]
        %v323 = vld [vmem:[#allocation5 + $0xa0] sm:$0xff]
        %v324 = vld [vmem:[#allocation5 + $0xa8] sm:$0xff]
        %v325 = vld [vmem:[#allocation5 + $0xb0] sm:$0xff]
        %v326 = vld [vmem:[#allocation5 + $0xb8] sm:$0xff]
        %v327 = vld [vmem:[#allocation5 + $0xc0] sm:$0xff]
        %v328 = vld [vmem:[#allocation5 + $0xc8] sm:$0xff]
        %v329 = vld [vmem:[#allocation5 + $0xd0] sm:$0xff]
        %v330 = vld [vmem:[#allocation5 + $0xd8] sm:$0xff]
        %v331 = vld [vmem:[#allocation5 + $0xe0] sm:$0xff]
        %v332 = vld [vmem:[#allocation5 + $0xe8] sm:$0xff]
        %v333 = vld [vmem:[#allocation5 + $0xf0] sm:$0xff]
        %v334 = vld [vmem:[#allocation5 + $0xf8] sm:$0xff]
        %v335 = vld [vmem:[#allocation7] sm:$0x3]
        %v337 = vperm.slane %v335, 0
        %v338 = vperm.slane %v335, 1
        %341 = vmatpush.xpose.msra.mxu0 %v318
        %342 = vmatpush.xpose.msra.mxu0 %v317
        %343 = vmatpush.xpose.msra.mxu0 %v316
        %344 = vmatpush.xpose.msra.mxu0 %v315
        %345 = vmatpush.xpose.msra.mxu0 %v314
        %346 = vmatpush.xpose.msra.mxu0 %v313
        %347 = vmatpush.xpose.msra.mxu0 %v312
        %348 = vmatpush.xpose.msra.mxu0 %v311
        %349 = vmatpush.xpose.msra.mxu0 %v310
        %350 = vmatpush.xpose.msra.mxu0 %v309
        %351 = vmatpush.xpose.msra.mxu0 %v308
        %352 = vmatpush.xpose.msra.mxu0 %v307
        %353 = vmatpush.xpose.msra.mxu0 %v306
        %354 = vmatpush.xpose.msra.mxu0 %v305
        %355 = vmatpush.xpose.msra.mxu0 %v304
        %356 = vmatpush.xpose.msra.mxu0 %v303
        %357 = vmatmul.f32.gmra.mxu0 %v295
        %v358 = vpop.f32.mrf.mxu0
        %v359 = vadd.f32 %v337, %v358
        %360 = vmatmul.f32.gmra.mxu0 %v296
        %v361 = vpop.f32.mrf.mxu0
        %v362 = vadd.f32 %v337, %v361
        %363 = vmatmul.f32.gmra.mxu0 %v297
        %v364 = vpop.f32.mrf.mxu0
        %v365 = vadd.f32 %v337, %v364
        %366 = vmatmul.f32.gmra.mxu0 %v298
        %v367 = vpop.f32.mrf.mxu0
        %v368 = vadd.f32 %v337, %v367
        %369 = vmatmul.f32.gmra.mxu0 %v299
        %v370 = vpop.f32.mrf.mxu0
        %v371 = vadd.f32 %v337, %v370
        %372 = vmatmul.f32.gmra.mxu0 %v300
        %v373 = vpop.f32.mrf.mxu0
        %v374 = vadd.f32 %v337, %v373
        %375 = vmatmul.f32.gmra.mxu0 %v301
        %v376 = vpop.f32.mrf.mxu0
        %v377 = vadd.f32 %v337, %v376
        %378 = vmatmul.f32.gmra.mxu0 %v302
        %v379 = vpop.f32.mrf.mxu0
        %v380 = vadd.f32 %v337, %v379
        %381 = vdwg.mxu0
        %382 = vmatpush.xpose.msra.mxu0 %v334
        %383 = vmatpush.xpose.msra.mxu0 %v333
        %384 = vmatpush.xpose.msra.mxu0 %v332
        %385 = vmatpush.xpose.msra.mxu0 %v331
        %386 = vmatpush.xpose.msra.mxu0 %v330
        %387 = vmatpush.xpose.msra.mxu0 %v329
        %388 = vmatpush.xpose.msra.mxu0 %v328
        %389 = vmatpush.xpose.msra.mxu0 %v327
        %390 = vmatpush.xpose.msra.mxu0 %v326
        %391 = vmatpush.xpose.msra.mxu0 %v325
        %392 = vmatpush.xpose.msra.mxu0 %v324
        %393 = vmatpush.xpose.msra.mxu0 %v323
        %394 = vmatpush.xpose.msra.mxu0 %v322
        %395 = vmatpush.xpose.msra.mxu0 %v321
        %396 = vmatpush.xpose.msra.mxu0 %v320
        %397 = vmatpush.xpose.msra.mxu0 %v319
        %398 = vmatmul.f32.gmra.mxu0 %v295
        %v399 = vpop.f32.mrf.mxu0
        %v400 = vadd.f32 %v338, %v399
        %401 = vmatmul.f32.gmra.mxu0 %v296
        %v402 = vpop.f32.mrf.mxu0
        %v403 = vadd.f32 %v338, %v402
        %404 = vmatmul.f32.gmra.mxu0 %v297
        %v405 = vpop.f32.mrf.mxu0
        %v406 = vadd.f32 %v338, %v405
        %407 = vmatmul.f32.gmra.mxu0 %v298
        %v408 = vpop.f32.mrf.mxu0
        %v409 = vadd.f32 %v338, %v408
        %410 = vmatmul.f32.gmra.mxu0 %v299
        %v411 = vpop.f32.mrf.mxu0
        %v412 = vadd.f32 %v338, %v411
        %413 = vmatmul.f32.gmra.mxu0 %v300
        %v414 = vpop.f32.mrf.mxu0
        %v415 = vadd.f32 %v338, %v414
        %416 = vmatmul.f32.gmra.mxu0 %v301
        %v417 = vpop.f32.mrf.mxu0
        %v418 = vadd.f32 %v338, %v417
        %419 = vmatmul.f32.gmra.mxu0 %v302
        %v420 = vpop.f32.mrf.mxu0
        %v421 = vadd.f32 %v338, %v420
        %422 = vdwg.mxu0
        %v423 = vmax.f32 %v359, 0.0
        %v424 = vmax.f32 %v400, 0.0
        %v425 = vmax.f32 %v362, 0.0
        %v426 = vmax.f32 %v403, 0.0
        %v427 = vmax.f32 %v365, 0.0
        %v428 = vmax.f32 %v406, 0.0
        %v429 = vmax.f32 %v368, 0.0
        %v430 = vmax.f32 %v409, 0.0
        %v431 = vmax.f32 %v371, 0.0
        %v432 = vmax.f32 %v412, 0.0
        %v433 = vmax.f32 %v374, 0.0
        %v434 = vmax.f32 %v415, 0.0
        %v435 = vmax.f32 %v377, 0.0
        %v436 = vmax.f32 %v418, 0.0
        %v437 = vmax.f32 %v380, 0.0
        %v438 = vmax.f32 %v421, 0.0
        %v439 = vld [vmem:[#allocation8] sm:$0xff]
        %v440 = vld [vmem:[#allocation8 + $0x8] sm:$0xff]
        %v441 = vld [vmem:[#allocation8 + $0x10] sm:$0xff]
        %v442 = vld [vmem:[#allocation8 + $0x18] sm:$0xff]
        %v443 = vld [vmem:[#allocation8 + $0x20] sm:$0xff]
        %v444 = vld [vmem:[#allocation8 + $0x28] sm:$0xff]
        %v445 = vld [vmem:[#allocation8 + $0x30] sm:$0xff]
        %v446 = vld [vmem:[#allocation8 + $0x38] sm:$0xff]
        %v447 = vld [vmem:[#allocation8 + $0x40] sm:$0xff]
        %v448 = vld [vmem:[#allocation8 + $0x48] sm:$0xff]
        %v449 = vld [vmem:[#allocation8 + $0x50] sm:$0xff]
        %v450 = vld [vmem:[#allocation8 + $0x58] sm:$0xff]
        %v451 = vld [vmem:[#allocation8 + $0x60] sm:$0xff]
        %v452 = vld [vmem:[#allocation8 + $0x68] sm:$0xff]
        %v453 = vld [vmem:[#allocation8 + $0x70] sm:$0xff]
        %v454 = vld [vmem:[#allocation8 + $0x78] sm:$0xff]
        %v455 = vld [vmem:[#allocation8 + $0x80] sm:$0xff]
        %v456 = vld [vmem:[#allocation8 + $0x88] sm:$0xff]
        %v457 = vld [vmem:[#allocation8 + $0x90] sm:$0xff]
        %v458 = vld [vmem:[#allocation8 + $0x98] sm:$0xff]
        %v459 = vld [vmem:[#allocation8 + $0xa0] sm:$0xff]
        %v460 = vld [vmem:[#allocation8 + $0xa8] sm:$0xff]
        %v461 = vld [vmem:[#allocation8 + $0xb0] sm:$0xff]
        %v462 = vld [vmem:[#allocation8 + $0xb8] sm:$0xff]
        %v463 = vld [vmem:[#allocation8 + $0xc0] sm:$0xff]
        %v464 = vld [vmem:[#allocation8 + $0xc8] sm:$0xff]
        %v465 = vld [vmem:[#allocation8 + $0xd0] sm:$0xff]
        %v466 = vld [vmem:[#allocation8 + $0xd8] sm:$0xff]
        %v467 = vld [vmem:[#allocation8 + $0xe0] sm:$0xff]
        %v468 = vld [vmem:[#allocation8 + $0xe8] sm:$0xff]
        %v469 = vld [vmem:[#allocation8 + $0xf0] sm:$0xff]
        %v470 = vld [vmem:[#allocation8 + $0xf8] sm:$0xff]
        %v471 = vld [vmem:[%s4] sm:$0x1]
        %v473 = vperm.slane %v471, 0
        %475 = vmatpush.xpose.msra.mxu0 %v469
        %476 = vmatpush.xpose.msra.mxu0 %v467
        %477 = vmatpush.xpose.msra.mxu0 %v465
        %478 = vmatpush.xpose.msra.mxu0 %v463
        %479 = vmatpush.xpose.msra.mxu0 %v461
        %480 = vmatpush.xpose.msra.mxu0 %v459
        %481 = vmatpush.xpose.msra.mxu0 %v457
        %482 = vmatpush.xpose.msra.mxu0 %v455
        %483 = vmatpush.xpose.msra.mxu0 %v453
        %484 = vmatpush.xpose.msra.mxu0 %v451
        %485 = vmatpush.xpose.msra.mxu0 %v449
        %486 = vmatpush.xpose.msra.mxu0 %v447
        %487 = vmatpush.xpose.msra.mxu0 %v445
        %488 = vmatpush.xpose.msra.mxu0 %v443
        %489 = vmatpush.xpose.msra.mxu0 %v441
        %490 = vmatpush.xpose.msra.mxu0 %v439
        %491 = vmatmul.f32.gmra.mxu0 %v423
        %v492 = vpop.f32.mrf.mxu0
        %v493 = vadd.f32 %v473, %v492
        %494 = vmatmul.f32.gmra.mxu0 %v425
        %v495 = vpop.f32.mrf.mxu0
        %v496 = vadd.f32 %v473, %v495
        %497 = vmatmul.f32.gmra.mxu0 %v427
        %v498 = vpop.f32.mrf.mxu0
        %v499 = vadd.f32 %v473, %v498
        %500 = vmatmul.f32.gmra.mxu0 %v429
        %v501 = vpop.f32.mrf.mxu0
        %v502 = vadd.f32 %v473, %v501
        %503 = vmatmul.f32.gmra.mxu0 %v431
        %v504 = vpop.f32.mrf.mxu0
        %v505 = vadd.f32 %v473, %v504
        %506 = vmatmul.f32.gmra.mxu0 %v433
        %v507 = vpop.f32.mrf.mxu0
        %v508 = vadd.f32 %v473, %v507
        %509 = vmatmul.f32.gmra.mxu0 %v435
        %v510 = vpop.f32.mrf.mxu0
        %v511 = vadd.f32 %v473, %v510
        %512 = vmatmul.f32.gmra.mxu0 %v437
        %v513 = vpop.f32.mrf.mxu0
        %v514 = vadd.f32 %v473, %v513
        %515 = vdwg.mxu0
        %516 = vmatpush.xpose.msra.mxu0 %v470
        %517 = vmatpush.xpose.msra.mxu0 %v468
        %518 = vmatpush.xpose.msra.mxu0 %v466
        %519 = vmatpush.xpose.msra.mxu0 %v464
        %520 = vmatpush.xpose.msra.mxu0 %v462
        %521 = vmatpush.xpose.msra.mxu0 %v460
        %522 = vmatpush.xpose.msra.mxu0 %v458
        %523 = vmatpush.xpose.msra.mxu0 %v456
        %524 = vmatpush.xpose.msra.mxu0 %v454
        %525 = vmatpush.xpose.msra.mxu0 %v452
        %526 = vmatpush.xpose.msra.mxu0 %v450
        %527 = vmatpush.xpose.msra.mxu0 %v448
        %528 = vmatpush.xpose.msra.mxu0 %v446
        %529 = vmatpush.xpose.msra.mxu0 %v444
        %530 = vmatpush.xpose.msra.mxu0 %v442
        %531 = vmatpush.xpose.msra.mxu0 %v440
        %532 = vmatmul.f32.gmra.mxu0 %v424
        %v533 = vpop.f32.mrf.mxu0
        %v534 = vadd.f32 %v493, %v533
        %535 = vmatmul.f32.gmra.mxu0 %v426
        %v536 = vpop.f32.mrf.mxu0
        %v537 = vadd.f32 %v496, %v536
        %538 = vmatmul.f32.gmra.mxu0 %v428
        %v539 = vpop.f32.mrf.mxu0
        %v540 = vadd.f32 %v499, %v539
        %541 = vmatmul.f32.gmra.mxu0 %v430
        %v542 = vpop.f32.mrf.mxu0
        %v543 = vadd.f32 %v502, %v542
        %544 = vmatmul.f32.gmra.mxu0 %v432
        %v545 = vpop.f32.mrf.mxu0
        %v546 = vadd.f32 %v505, %v545
        %547 = vmatmul.f32.gmra.mxu0 %v434
        %v548 = vpop.f32.mrf.mxu0
        %v549 = vadd.f32 %v508, %v548
        %550 = vmatmul.f32.gmra.mxu0 %v436
        %v551 = vpop.f32.mrf.mxu0
        %v552 = vadd.f32 %v511, %v551
        %553 = vmatmul.f32.gmra.mxu0 %v438
        %v554 = vpop.f32.mrf.mxu0
        %v555 = vadd.f32 %v514, %v554
        %556 = vdwg.mxu0
        %557 = vst [vmem:[%s292] sm:$0xff] %v534
        %558 = vst [vmem:[%s292 + $0x8] sm:$0xff] %v537
        %559 = vst [vmem:[%s292 + $0x10] sm:$0xff] %v540
        %560 = vst [vmem:[%s292 + $0x18] sm:$0xff] %v543
        %561 = vst [vmem:[%s292 + $0x20] sm:$0xff] %v546
        %562 = vst [vmem:[%s292 + $0x28] sm:$0xff] %v549
        %563 = vst [vmem:[%s292 + $0x30] sm:$0xff] %v552
        %564 = vst [vmem:[%s292 + $0x38] sm:$0xff] %v555
        %s565 = sand.u32 %s142, 1
        %s566 = scalar_lea.sflag [#allocation4], %s565
        %s567 = sand.u32 %s142, 1
        %s568 = smul.addr %s567, 64
        %s569 = scalar_lea.vmem [#allocation10], %s568
        // Predicated region
        $region57: #{tpu_custom_call.1} parent=39 // pred_check
          %p570 = pneg %p152
        $region58: #{tpu_custom_call.1} parent=39 // pred_check_branch
          %572 = sbr.rel (%p570) target = $region60
        $region59: #{tpu_custom_call.1} parent=39 // pred_region
          %s573 = smul.u32 8, %s24
          %575 = vsyncadd %s566, 0
          %s576 = smul.addr %s573, 8
          %s577 = scalar_lea.hbm %s5, %s576
          %s578 = sshll.u32 %s569, 4
          %s579 = int_to_ptr.vmem [resolvable:$true] %s578
          %s580 = sshll.u32 %s577, 4
          %s581 = int_to_ptr.hbm [resolvable:$true] %s580
          %586 = dma.vmem_to_hbm [thread:$0]  %s579, 1024, %s581, %s566, 128, 128, 8
        $region60: #{tpu_custom_call.1} parent=39 // pred_fallthru
          _
      $region40: #{tpu_custom_call.1} parent=5 // pred_fallthru
        _
      %p587 = scmp.le.s32.totalorder 2, %s19
      // Predicated region
      $region61: #{tpu_custom_call.1} parent=5 // pred_check
        %p588 = pneg %p587
      $region62: #{tpu_custom_call.1} parent=5 // pred_check_branch
        %590 = sbr.rel (%p588) target = $region64
      $region63: #{tpu_custom_call.1} parent=5 // pred_region
        %s591 = ssub.s32 %s19, 2
        // Predicated region
        $region65: #{tpu_custom_call.1} parent=63 // pred_check
          %p592 = pneg %p158
        $region66: #{tpu_custom_call.1} parent=63 // pred_check_branch
          %594 = sbr.rel (%p592) target = $region68
        $region67: #{tpu_custom_call.1} parent=63 // pred_region
          %s595 = sand.u32 %s143, 1
          %s596 = scalar_lea.sflag [#allocation4], %s595
          %s597 = sand.u32 %s143, 1
          %s598 = smul.addr %s597, 64
          %s599 = scalar_lea.vmem [#allocation10], %s598
          %601 = dma.done %s596, 1024
        $region68: #{tpu_custom_call.1} parent=63 // pred_fallthru
          _
      $region64: #{tpu_custom_call.1} parent=5 // pred_fallthru
        _
    $region6: #{tpu_custom_call.1} parent=1 // loop_footer
      %s23 = sadd.s32 1, %s19
    $region7: #{tpu_custom_call.1} parent=1 // loop_footer_branch
      %18 = sbr.rel target = $region3
    $region8: #{tpu_custom_call.1} parent=1 // loop_exit
      _
    %602 = vsyncpa [#allocation3], 1
    %s603 = scalar_lea.sflag [#allocation3], 1
    %604 = vsyncpa %s603, 1
    %605 = vsyncpa [#allocation6], 1
    %606 = vsyncpa [#allocation9], 1
    %607 = vsyncpa [#allocation4], 1
    %s608 = scalar_lea.sflag [#allocation4], 1
    %609 = vsyncpa %s608, 1

</llo_original>
